<compile_context>
chip_gen: v5e
topology: v5e:2x2
jax: 0.10.0
libtpu: 0.0.40
codegen_flags: <defaults>
</compile_context>

<pallas_src>
import jax
import jax.numpy as jnp
import numpy as np
from jax.experimental import pallas as pl
from jax.experimental.pallas import tpu as pltpu


def seq_diffeq_kernel(t_ref,                       # SMEM (E,) prefetched t's
                      x_ref,                       # (TN, Dp)  bf16
                      w1x_ref, w1t_ref, b1_ref,    # (Dp,Hp) bf16, (1,Hp) f32, (1,Hp) f32
                      w2x_ref, w2t_ref, b2_ref,    # (Hp,Dp) bf16, (1,Dp) f32, (1,Dp) f32
                      o_ref):                      # (TN, Dp)  f32
    t = t_ref[pl.program_id(0)]                    # scalar read from SMEM

    # Effective biases: fold t*w_t + b once per grid step on (1, H)/(1, D)
    # rows instead of two full-tile broadcast adds (f32 on the VPU).
    b1_eff = t * w1t_ref[...] + b1_ref[...]
    b2_eff = t * w2t_ref[...] + b2_ref[...]

    # Layer 1: ConcatLinear(D, H) == [t, x] @ W1 + b1  (bf16 MXU, f32 accum).
    h = jnp.dot(x_ref[...], w1x_ref[...], preferred_element_type=jnp.float32)
    h = h + b1_eff

    # Layer 2: Tanh (regular layer; diffeq_wrapper ignores t) — f32 on the EUP.
    h = jnp.tanh(h)

    # Layer 3: ConcatLinear(H, D) == [t, h] @ W2 + b2.
    y = jnp.dot(h.astype(w2x_ref.dtype), w2x_ref[...],
                preferred_element_type=jnp.float32)
    o_ref[...] = (y + b2_eff).astype(o_ref.dtype)


def _pad2(a, rows, cols):
    return jnp.pad(a, ((0, rows - a.shape[0]), (0, cols - a.shape[1])))


def sequential_diffeq(ts, x, params, *, tile_n=256):
    """Fused Pallas forward of SequentialDiffEq(ConcatLinear, Tanh, ConcatLinear).

    ts: (E,) float32 time values (one per RHS evaluation / solver stage).
    x : (E, N, D) float32 states.
    Returns (E, N, D) float32.
    """
    w1x, w1t, b1, w2x, w2t, b2 = params
    E, N, D = x.shape
    H = w1x.shape[1]

    # Lane-dense padding of the feature dims and batch-tile padding.
    Dp = max(128, pl.cdiv(D, 128) * 128)
    Hp = max(128, pl.cdiv(H, 128) * 128)
    TN = min(tile_n, max(8, pl.cdiv(N, 8) * 8))
    Np = pl.cdiv(N, TN) * TN

    # Pad + cast MXU operands to bf16; keep t-weights / biases in f32.
    x_p = jnp.pad(x, ((0, 0), (0, Np - N), (0, Dp - D))).astype(jnp.bfloat16)
    w1x_p = _pad2(w1x, Dp, Hp).astype(jnp.bfloat16)
    w2x_p = _pad2(w2x, Hp, Dp).astype(jnp.bfloat16)
    w1t_p = _pad2(w1t, 1, Hp)
    b1_p = _pad2(b1, 1, Hp)
    w2t_p = _pad2(w2t, 1, Dp)
    b2_p = _pad2(b2, 1, Dp)
    ts_f = jnp.asarray(ts, jnp.float32)

    grid = (E, Np // TN)

    grid_spec = pltpu.PrefetchScalarGridSpec(
        num_scalar_prefetch=1,               # ts -> SMEM, passed to index_maps
        grid=grid,
        in_specs=[
            pl.BlockSpec((None, TN, Dp), lambda e, n, t: (e, n, 0)),   # x tile
            pl.BlockSpec((Dp, Hp), lambda e, n, t: (0, 0)),            # W1x (resident)
            pl.BlockSpec((1, Hp), lambda e, n, t: (0, 0)),             # w1t
            pl.BlockSpec((1, Hp), lambda e, n, t: (0, 0)),             # b1
            pl.BlockSpec((Hp, Dp), lambda e, n, t: (0, 0)),            # W2x (resident)
            pl.BlockSpec((1, Dp), lambda e, n, t: (0, 0)),             # w2t
            pl.BlockSpec((1, Dp), lambda e, n, t: (0, 0)),             # b2
        ],
        out_specs=pl.BlockSpec((None, TN, Dp), lambda e, n, t: (e, n, 0)),
    )

    y_p = pl.pallas_call(
        seq_diffeq_kernel,
        out_shape=jax.ShapeDtypeStruct((E, Np, Dp), jnp.float32),
        grid_spec=grid_spec,
        compiler_params=pltpu.CompilerParams(
            dimension_semantics=("parallel", "parallel")),  # megacore on v7x
    )(ts_f, x_p, w1x_p, w1t_p, b1_p, w2x_p, w2t_p, b2_p)

    return y_p[:, :N, :D]


def reference_forward(ts, x, params):
    """Pure-JAX (f32) reference mirroring the PyTorch layer chain exactly."""
    w1x, w1t, b1, w2x, w2t, b2 = params
    t = ts[:, None, None]                                   # (E,1,1)
    h = jnp.einsum('end,dh->enh', x, w1x) + t * w1t + b1    # ConcatLinear
    h = jnp.tanh(h)                                         # Tanh (ignores t)
    y = jnp.einsum('enh,hd->end', h, w2x) + t * w2t + b2    # ConcatLinear
    return y


def init_params(key, D, H):
    """Deterministic init; shapes follow nn.Linear(D+1, H), nn.Linear(H+1, D)."""
    k1, k2, k3, k4 = jax.random.split(key, 4)
    s1 = 1.0 / np.sqrt(D + 1)
    s2 = 1.0 / np.sqrt(H + 1)
    w1_full = jax.random.uniform(k1, (D + 1, H), jnp.float32, -s1, s1)
    b1 = jax.random.uniform(k2, (1, H), jnp.float32, -s1, s1)
    w2_full = jax.random.uniform(k3, (H + 1, D), jnp.float32, -s2, s2)
    b2 = jax.random.uniform(k4, (1, D), jnp.float32, -s2, s2)
    # Split the "concat t" column out of the full weight:
    # Linear(concat([t, x])) == x @ W_x + t * w_t + b.
    w1t, w1x = w1_full[:1, :], w1_full[1:, :]
    w2t, w2x = w2_full[:1, :], w2_full[1:, :]
    return (w1x, w1t, b1, w2x, w2t, b2)


if __name__ == "__main__":
    D, H = 32, 64        # feature / hidden dims of the CNF diffeq net
    E, N = 4, 512        # E solver-stage evaluations of a batch of N states

    key = jax.random.PRNGKey(0)
    kp, kx, kt = jax.random.split(key, 3)
    params = init_params(kp, D, H)
    x = jax.random.normal(kx, (E, N, D), jnp.float32)
    ts = jax.random.uniform(kt, (E,), jnp.float32)

    y = sequential_diffeq(ts, x, params)
    y = jax.block_until_ready(y)

    y_ref = reference_forward(ts, x, params)
    # bf16 MXU operands -> loosened tolerance vs. pure-f32 reference.
    np.testing.assert_allclose(np.asarray(y), np.asarray(y_ref),
                               rtol=2e-2, atol=2e-2)

    print("KERNEL_OK")
</pallas_src>

<mosaic_0001>
module attributes {stable_mosaic.version = 11 : i64} {
  func.func @seq_diffeq_kernel(%arg0: i32, %arg1: i32, %arg2: memref<4xf32, #tpu.memory_space<smem>>, %arg3: memref<1x256x128xbf16, #tpu.memory_space<vmem>>, %arg4: memref<128x128xbf16, #tpu.memory_space<vmem>>, %arg5: memref<1x128xf32, #tpu.memory_space<vmem>>, %arg6: memref<1x128xf32, #tpu.memory_space<vmem>>, %arg7: memref<128x128xbf16, #tpu.memory_space<vmem>>, %arg8: memref<1x128xf32, #tpu.memory_space<vmem>>, %arg9: memref<1x128xf32, #tpu.memory_space<vmem>>, %arg10: memref<1x256x128xf32, #tpu.memory_space<vmem>>) attributes {dimension_semantics = [#tpu.dimension_semantics<parallel>, #tpu.dimension_semantics<parallel>], iteration_bounds = array<i64: 4, 2>, scalar_prefetch = 1 : i64, scratch_operands = 0 : i64, tpu.core_type = #tpu.core_type<tc>, window_params = [{transform_indices = @transform_0, window_bounds = array<i64: 1, 256, 128>}, {pipeline_mode = #tpu.pipeline_mode<synchronous>, transform_indices = @transform_1, window_bounds = array<i64: 128, 128>}, {pipeline_mode = #tpu.pipeline_mode<synchronous>, transform_indices = @transform_2, window_bounds = array<i64: 1, 128>}, {pipeline_mode = #tpu.pipeline_mode<synchronous>, transform_indices = @transform_3, window_bounds = array<i64: 1, 128>}, {pipeline_mode = #tpu.pipeline_mode<synchronous>, transform_indices = @transform_4, window_bounds = array<i64: 128, 128>}, {pipeline_mode = #tpu.pipeline_mode<synchronous>, transform_indices = @transform_5, window_bounds = array<i64: 1, 128>}, {pipeline_mode = #tpu.pipeline_mode<synchronous>, transform_indices = @transform_6, window_bounds = array<i64: 1, 128>}, {transform_indices = @transform_7, window_bounds = array<i64: 1, 256, 128>}]} {
    %0 = arith.index_cast %arg0 : i32 to index
    %1 = memref.load %arg2[%0] : memref<4xf32, #tpu.memory_space<smem>>
    %c0 = arith.constant 0 : index
    %c0_0 = arith.constant 0 : index
    %2 = vector.load %arg5[%c0, %c0_0] : memref<1x128xf32, #tpu.memory_space<vmem>>, vector<1x128xf32>
    %3 = vector.broadcast %1 : f32 to vector<1x128xf32>
    %4 = arith.mulf %3, %2 : vector<1x128xf32>
    %c0_1 = arith.constant 0 : index
    %c0_2 = arith.constant 0 : index
    %5 = vector.load %arg6[%c0_1, %c0_2] : memref<1x128xf32, #tpu.memory_space<vmem>>, vector<1x128xf32>
    %6 = arith.addf %4, %5 : vector<1x128xf32>
    %c0_3 = arith.constant 0 : index
    %c0_4 = arith.constant 0 : index
    %7 = vector.load %arg8[%c0_3, %c0_4] : memref<1x128xf32, #tpu.memory_space<vmem>>, vector<1x128xf32>
    %8 = vector.broadcast %1 : f32 to vector<1x128xf32>
    %9 = arith.mulf %8, %7 : vector<1x128xf32>
    %c0_5 = arith.constant 0 : index
    %c0_6 = arith.constant 0 : index
    %10 = vector.load %arg9[%c0_5, %c0_6] : memref<1x128xf32, #tpu.memory_space<vmem>>, vector<1x128xf32>
    %11 = arith.addf %9, %10 : vector<1x128xf32>
    %c0_7 = arith.constant 0 : index
    %c0_8 = arith.constant 0 : index
    %c0_9 = arith.constant 0 : index
    %12 = vector.load %arg3[%c0_7, %c0_8, %c0_9] : memref<1x256x128xbf16, #tpu.memory_space<vmem>>, vector<1x256x128xbf16>
    %13 = vector.shape_cast %12 : vector<1x256x128xbf16> to vector<256x128xbf16>
    %c0_10 = arith.constant 0 : index
    %c0_11 = arith.constant 0 : index
    %14 = vector.load %arg4[%c0_10, %c0_11] : memref<128x128xbf16, #tpu.memory_space<vmem>>, vector<128x128xbf16>
    %cst = arith.constant dense<0.000000e+00> : vector<256x128xf32>
    %15 = tpu.matmul %13, %14, %cst {dimension_numbers = #tpu.dot_dimension_numbers<[1], [0], [0], [1], [0, 0, 1, 1], [], []>} : vector<256x128xbf16>, vector<128x128xbf16>, vector<256x128xf32> -> vector<256x128xf32>
    %16 = vector.broadcast %6 : vector<1x128xf32> to vector<256x128xf32>
    %17 = arith.addf %15, %16 : vector<256x128xf32>
    %18 = math.tanh %17 : vector<256x128xf32>
    %19 = arith.truncf %18 : vector<256x128xf32> to vector<256x128xbf16>
    %c0_12 = arith.constant 0 : index
    %c0_13 = arith.constant 0 : index
    %20 = vector.load %arg7[%c0_12, %c0_13] : memref<128x128xbf16, #tpu.memory_space<vmem>>, vector<128x128xbf16>
    %cst_14 = arith.constant dense<0.000000e+00> : vector<256x128xf32>
    %21 = tpu.matmul %19, %20, %cst_14 {dimension_numbers = #tpu.dot_dimension_numbers<[1], [0], [0], [1], [0, 0, 1, 1], [], []>} : vector<256x128xbf16>, vector<128x128xbf16>, vector<256x128xf32> -> vector<256x128xf32>
    %22 = vector.broadcast %11 : vector<1x128xf32> to vector<256x128xf32>
    %23 = arith.addf %21, %22 : vector<256x128xf32>
    %c0_15 = arith.constant 0 : index
    %c0_16 = arith.constant 0 : index
    %c0_17 = arith.constant 0 : index
    %24 = vector.load %arg10[%c0_15, %c0_16, %c0_17] : memref<1x256x128xf32, #tpu.memory_space<vmem>>, vector<1x256x128xf32>
    %25 = vector.shape_cast %24 : vector<1x256x128xf32> to vector<256x128xf32>
    %26 = vector.shape_cast %23 : vector<256x128xf32> to vector<1x256x128xf32>
    tpu.vector_store %arg10[%c0_15, %c0_16, %c0_17], %26 {strides = array<i32>} : memref<1x256x128xf32, #tpu.memory_space<vmem>>, vector<1x256x128xf32>,
    return
  }
  func.func @transform_0(%arg0: i32, %arg1: i32, %arg2: memref<4xf32, #tpu.memory_space<smem>>) -> (i32, i32, i32) {
    %c0_i32 = arith.constant 0 : i32
    %c0_i32_0 = arith.constant 0 : i32
    return %arg0, %arg1, %c0_i32 : i32, i32, i32
  }
  func.func @transform_1(%arg0: i32, %arg1: i32, %arg2: memref<4xf32, #tpu.memory_space<smem>>) -> (i32, i32) {
    %c0_i32 = arith.constant 0 : i32
    %c0_i32_0 = arith.constant 0 : i32
    %c0_i32_1 = arith.constant 0 : i32
    return %c0_i32, %c0_i32_0 : i32, i32
  }
  func.func @transform_2(%arg0: i32, %arg1: i32, %arg2: memref<4xf32, #tpu.memory_space<smem>>) -> (i32, i32) {
    %c0_i32 = arith.constant 0 : i32
    %c0_i32_0 = arith.constant 0 : i32
    %c0_i32_1 = arith.constant 0 : i32
    return %c0_i32, %c0_i32_0 : i32, i32
  }
  func.func @transform_3(%arg0: i32, %arg1: i32, %arg2: memref<4xf32, #tpu.memory_space<smem>>) -> (i32, i32) {
    %c0_i32 = arith.constant 0 : i32
    %c0_i32_0 = arith.constant 0 : i32
    %c0_i32_1 = arith.constant 0 : i32
    return %c0_i32, %c0_i32_0 : i32, i32
  }
  func.func @transform_4(%arg0: i32, %arg1: i32, %arg2: memref<4xf32, #tpu.memory_space<smem>>) -> (i32, i32) {
    %c0_i32 = arith.constant 0 : i32
    %c0_i32_0 = arith.constant 0 : i32
    %c0_i32_1 = arith.constant 0 : i32
    return %c0_i32, %c0_i32_0 : i32, i32
  }
  func.func @transform_5(%arg0: i32, %arg1: i32, %arg2: memref<4xf32, #tpu.memory_space<smem>>) -> (i32, i32) {
    %c0_i32 = arith.constant 0 : i32
    %c0_i32_0 = arith.constant 0 : i32
    %c0_i32_1 = arith.constant 0 : i32
    return %c0_i32, %c0_i32_0 : i32, i32
  }
  func.func @transform_6(%arg0: i32, %arg1: i32, %arg2: memref<4xf32, #tpu.memory_space<smem>>) -> (i32, i32) {
    %c0_i32 = arith.constant 0 : i32
    %c0_i32_0 = arith.constant 0 : i32
    %c0_i32_1 = arith.constant 0 : i32
    return %c0_i32, %c0_i32_0 : i32, i32
  }
  func.func @transform_7(%arg0: i32, %arg1: i32, %arg2: memref<4xf32, #tpu.memory_space<smem>>) -> (i32, i32, i32) {
    %c0_i32 = arith.constant 0 : i32
    %c0_i32_0 = arith.constant 0 : i32
    return %arg0, %arg1, %c0_i32 : i32, i32, i32
  }
}

</mosaic_0001>

<llo_original>
// kernel: tpu_custom_call.1
$region0: #{tpu_custom_call.1}
  #allocation0 [shape = 'u32[]', space=smem, size = 0x4, offset = 0x4, fixed_abs, tag = 'smem constant byte address 0x4 - core index']
  #allocation1 [shape = 'u32[72,128]{1,0:T(1,128)}', space=vmem, size = 0x9000, scoped, tag = 'internal scratch']
  #allocation2 [shape = 's32[1]{0}', space=sflag, size = 0x4, scoped, tag = 'scoped memory for tpu_custom_call.1']
  #allocation3 [shape = 'u8[512]{0}', space=smem, size = 0x200, scoped, tag = 'prefetched SMEM operand 0']
  %s0 = inlined_call_operand.hbm [shape: f32[4], index: 0, kind: input, shape index: {}]
  %s1 = inlined_call_operand.hbm [shape: bf16[4,512,128], index: 1, kind: input, shape index: {}]
  %s2 = inlined_call_operand.hbm [shape: bf16[128,128], index: 2, kind: input, shape index: {}]
  %s3 = inlined_call_operand.vmem [shape: f32[1,128], index: 3, kind: input, shape index: {}]
  %s4 = inlined_call_operand.vmem [shape: f32[1,128], index: 4, kind: input, shape index: {}]
  %s5 = inlined_call_operand.hbm [shape: bf16[128,128], index: 5, kind: input, shape index: {}]
  %s6 = inlined_call_operand.vmem [shape: f32[1,128], index: 6, kind: input, shape index: {}]
  %s7 = inlined_call_operand.vmem [shape: f32[1,128], index: 7, kind: input, shape index: {}]
  %s8 = inlined_call_operand.hbm [shape: f32[4,512,128], index: 8, kind: output, shape index: {}]
  %s9 = sld [smem:[#allocation0]]
  $region73: #{tpu_custom_call.1} parent=0
    _
  %s11 = ssub.s32 1, %s9
  %s12 = scalar_select 0, %s11, %s9
  %s14 = sshll.u32 %s0, 4
  %s15 = int_to_ptr.hbm [resolvable:$true] %s14
  %17 = dma.hbm_to_smem %s15, 16, [#allocation3], [#allocation2]
  %19 = dma.done [#allocation2], 16
  %20 = sfence
  $region1: #{tpu_custom_call.1} parent=0
    #allocation4 [shape = 'u8[131072]{0}', space=vmem, size = 0x20000, scoped, tag = 'input window, operand 1']
    #allocation5 [shape = 's32[2]{0}', space=sflag, size = 0x8, scoped, tag = 'scoped memory for tpu_custom_call.1']
    #allocation6 [shape = 's32[2]{0}', space=sflag, size = 0x8, scoped, tag = 'scoped memory for tpu_custom_call.1']
    #allocation7 [shape = 'u8[32768]{0}', space=vmem, size = 0x8000, scoped, tag = 'input window, operand 2, single buffered']
    #allocation8 [shape = 's32[1]{0}', space=sflag, size = 0x4, scoped, tag = 'scoped memory for tpu_custom_call.1']
    #allocation9 [shape = 'u8[32768]{0}', space=vmem, size = 0x8000, scoped, tag = 'input window, operand 5, single buffered']
    #allocation10 [shape = 'u8[262144]{0}', space=vmem, size = 0x40000, scoped, tag = 'output window, operand 0']
    %21 = vsyncpa [#allocation5], 0
    %s22 = scalar_lea.sflag [#allocation5], 1
    %23 = vsyncpa %s22, 0
    %24 = vsyncpa [#allocation8], 0
    %25 = vsyncpa [#allocation6], 0
    %s26 = scalar_lea.sflag [#allocation6], 1
    %27 = vsyncpa %s26, 0
    loop: start=0, step=1, limit=10
    $region2: #{tpu_custom_call.1} parent=1 // loop_pre_header
      _
    $region3: #{tpu_custom_call.1} parent=1 // loop_header
      %s29 = sphi 0, %s33
      %p30 = scmp.ge.s32.totalorder %s29, 10
      %s36 = sphi 0, %s48
      %s37 = sphi 0, %s44
      %s38 = sphi 0, %s36
      %s39 = sphi 0, %s37
      %s40 = sphi 0, %s38
      %s41 = sphi 0, %s39
      %s53 = sphi 0, %s55
      %s56 = sphi 0, %s53
      %s57 = sphi 0, %s56
      %s73 = sphi 0, %s57
      %s77 = sphi 0, %s77
      %s79 = sphi 0, %s77
      %s80 = sphi 0, %s79
      %s94 = sphi 0, %s80
      %s98 = sphi 0, %s98
      %s100 = sphi 0, %s98
      %s101 = sphi 0, %s100
      %s115 = sphi 0, %s101
      %s119 = sphi 0, %s119
      %s121 = sphi 0, %s119
      %s122 = sphi 0, %s121
      %s136 = sphi 0, %s122
      %s140 = sphi 0, %s140
      %s142 = sphi 0, %s140
      %s143 = sphi 0, %s142
      %s157 = sphi 0, %s143
      %s161 = sphi 0, %s161
      %s163 = sphi 0, %s161
      %s164 = sphi 0, %s163
      %s178 = sphi 0, %s164
      %s182 = sphi 0, %s182
      %s184 = sphi 0, %s182
      %s185 = sphi 0, %s184
      %s199 = sphi 0, %s185
      %s207 = sphi 0, %s209
      %s210 = sphi 0, %s207
      %s211 = sphi 0, %s210
      %s227 = sphi 0, %s211
    $region4: #{tpu_custom_call.1} parent=1 // loop_header_branch
      %32 = sbr.rel (%p30) target = $region8
    $region5: #{tpu_custom_call.1} parent=1 // loop_body
      %s34 = ssub.s32 %s29, 1
      %s35 = ssub.s32 %s29, 2
      %s42 = sadd.s32 1, %s37
      %p43 = scmp.ge.s32.totalorder %s42, 2
      %s44 = scalar_select %p43, 0, %s42
      %s45 = sadd.s32 1, %s36
      %s46 = scalar_select %p43, %s45, %s36
      %p47 = scmp.ge.s32.totalorder %s46, 4
      %s48 = scalar_select %p47, 0, %s46
      %s49 = ssub.s32 %s36, %s48
      %s50 = ssub.s32 %s37, %s44
      %s51 = sor.u32 %s49, %s50
      %p52 = scmp.eq.s32.totalorder %s51, 0
      %s54 = sadd.s32 %s53, 1
      %s55 = scalar_select %p52, %s53, %s54
      %p58 = pneg %p52
      %p59 = scmp.eq.s32.totalorder %s29, 7
      %p60 = por %p58, %p59
      %p61 = scmp.ne.s32.totalorder %s53, %s56
      %p62 = scmp.eq.s32.totalorder %s29, 0
      %p63 = por %p61, %p62
      %p64 = scmp.ne.s32.totalorder %s53, %s56
      %p65 = scmp.eq.s32.totalorder %s34, 7
      %p66 = por %p64, %p65
      %p67 = scmp.ne.s32.totalorder %s56, %s57
      %p68 = scmp.eq.s32.totalorder %s34, 0
      %p69 = por %p67, %p68
      %p70 = scmp.ne.s32.totalorder %s56, %s57
      %p71 = scmp.eq.s32.totalorder %s35, 7
      %p72 = por %p70, %p71
      %p74 = scmp.ne.s32.totalorder %s57, %s73
      %p75 = scmp.eq.s32.totalorder %s35, 0
      %p76 = por %p74, %p75
      %s78 = sadd.s32 %s77, 1
      %p81 = scmp.eq.s32.totalorder %s29, 7
      %p82 = scmp.ne.s32.totalorder %s77, %s79
      %p83 = scmp.eq.s32.totalorder %s29, 0
      %p84 = por %p82, %p83
      %p85 = scmp.ne.s32.totalorder %s77, %s79
      %p86 = scmp.eq.s32.totalorder %s34, 7
      %p87 = por %p85, %p86
      %p88 = scmp.ne.s32.totalorder %s79, %s80
      %p89 = scmp.eq.s32.totalorder %s34, 0
      %p90 = por %p88, %p89
      %p91 = scmp.ne.s32.totalorder %s79, %s80
      %p92 = scmp.eq.s32.totalorder %s35, 7
      %p93 = por %p91, %p92
      %p95 = scmp.ne.s32.totalorder %s80, %s94
      %p96 = scmp.eq.s32.totalorder %s35, 0
      %p97 = por %p95, %p96
      %s99 = sadd.s32 %s98, 1
      %p102 = scmp.eq.s32.totalorder %s29, 7
      %p103 = scmp.ne.s32.totalorder %s98, %s100
      %p104 = scmp.eq.s32.totalorder %s29, 0
      %p105 = por %p103, %p104
      %p106 = scmp.ne.s32.totalorder %s98, %s100
      %p107 = scmp.eq.s32.totalorder %s34, 7
      %p108 = por %p106, %p107
      %p109 = scmp.ne.s32.totalorder %s100, %s101
      %p110 = scmp.eq.s32.totalorder %s34, 0
      %p111 = por %p109, %p110
      %p112 = scmp.ne.s32.totalorder %s100, %s101
      %p113 = scmp.eq.s32.totalorder %s35, 7
      %p114 = por %p112, %p113
      %p116 = scmp.ne.s32.totalorder %s101, %s115
      %p117 = scmp.eq.s32.totalorder %s35, 0
      %p118 = por %p116, %p117
      %s120 = sadd.s32 %s119, 1
      %p123 = scmp.eq.s32.totalorder %s29, 7
      %p124 = scmp.ne.s32.totalorder %s119, %s121
      %p125 = scmp.eq.s32.totalorder %s29, 0
      %p126 = por %p124, %p125
      %p127 = scmp.ne.s32.totalorder %s119, %s121
      %p128 = scmp.eq.s32.totalorder %s34, 7
      %p129 = por %p127, %p128
      %p130 = scmp.ne.s32.totalorder %s121, %s122
      %p131 = scmp.eq.s32.totalorder %s34, 0
      %p132 = por %p130, %p131
      %p133 = scmp.ne.s32.totalorder %s121, %s122
      %p134 = scmp.eq.s32.totalorder %s35, 7
      %p135 = por %p133, %p134
      %p137 = scmp.ne.s32.totalorder %s122, %s136
      %p138 = scmp.eq.s32.totalorder %s35, 0
      %p139 = por %p137, %p138
      %s141 = sadd.s32 %s140, 1
      %p144 = scmp.eq.s32.totalorder %s29, 7
      %p145 = scmp.ne.s32.totalorder %s140, %s142
      %p146 = scmp.eq.s32.totalorder %s29, 0
      %p147 = por %p145, %p146
      %p148 = scmp.ne.s32.totalorder %s140, %s142
      %p149 = scmp.eq.s32.totalorder %s34, 7
      %p150 = por %p148, %p149
      %p151 = scmp.ne.s32.totalorder %s142, %s143
      %p152 = scmp.eq.s32.totalorder %s34, 0
      %p153 = por %p151, %p152
      %p154 = scmp.ne.s32.totalorder %s142, %s143
      %p155 = scmp.eq.s32.totalorder %s35, 7
      %p156 = por %p154, %p155
      %p158 = scmp.ne.s32.totalorder %s143, %s157
      %p159 = scmp.eq.s32.totalorder %s35, 0
      %p160 = por %p158, %p159
      %s162 = sadd.s32 %s161, 1
      %p165 = scmp.eq.s32.totalorder %s29, 7
      %p166 = scmp.ne.s32.totalorder %s161, %s163
      %p167 = scmp.eq.s32.totalorder %s29, 0
      %p168 = por %p166, %p167
      %p169 = scmp.ne.s32.totalorder %s161, %s163
      %p170 = scmp.eq.s32.totalorder %s34, 7
      %p171 = por %p169, %p170
      %p172 = scmp.ne.s32.totalorder %s163, %s164
      %p173 = scmp.eq.s32.totalorder %s34, 0
      %p174 = por %p172, %p173
      %p175 = scmp.ne.s32.totalorder %s163, %s164
      %p176 = scmp.eq.s32.totalorder %s35, 7
      %p177 = por %p175, %p176
      %p179 = scmp.ne.s32.totalorder %s164, %s178
      %p180 = scmp.eq.s32.totalorder %s35, 0
      %p181 = por %p179, %p180
      %s183 = sadd.s32 %s182, 1
      %p186 = scmp.eq.s32.totalorder %s29, 7
      %p187 = scmp.ne.s32.totalorder %s182, %s184
      %p188 = scmp.eq.s32.totalorder %s29, 0
      %p189 = por %p187, %p188
      %p190 = scmp.ne.s32.totalorder %s182, %s184
      %p191 = scmp.eq.s32.totalorder %s34, 7
      %p192 = por %p190, %p191
      %p193 = scmp.ne.s32.totalorder %s184, %s185
      %p194 = scmp.eq.s32.totalorder %s34, 0
      %p195 = por %p193, %p194
      %p196 = scmp.ne.s32.totalorder %s184, %s185
      %p197 = scmp.eq.s32.totalorder %s35, 7
      %p198 = por %p196, %p197
      %p200 = scmp.ne.s32.totalorder %s185, %s199
      %p201 = scmp.eq.s32.totalorder %s35, 0
      %p202 = por %p200, %p201
      %s203 = ssub.s32 %s36, %s48
      %s204 = ssub.s32 %s37, %s44
      %s205 = sor.u32 %s203, %s204
      %p206 = scmp.eq.s32.totalorder %s205, 0
      %s208 = sadd.s32 %s207, 1
      %s209 = scalar_select %p206, %s207, %s208
      %p212 = pneg %p206
      %p213 = scmp.eq.s32.totalorder %s29, 7
      %p214 = por %p212, %p213
      %p215 = scmp.ne.s32.totalorder %s207, %s210
      %p216 = scmp.eq.s32.totalorder %s29, 0
      %p217 = por %p215, %p216
      %p218 = scmp.ne.s32.totalorder %s207, %s210
      %p219 = scmp.eq.s32.totalorder %s34, 7
      %p220 = por %p218, %p219
      %p221 = scmp.ne.s32.totalorder %s210, %s211
      %p222 = scmp.eq.s32.totalorder %s34, 0
      %p223 = por %p221, %p222
      %p224 = scmp.ne.s32.totalorder %s210, %s211
      %p225 = scmp.eq.s32.totalorder %s35, 7
      %p226 = por %p224, %p225
      %p228 = scmp.ne.s32.totalorder %s211, %s227
      %p229 = scmp.eq.s32.totalorder %s35, 0
      %p230 = por %p228, %p229
      %p231 = scmp.le.s32.totalorder 1, %s29
      %p232 = scmp.lt.s32.totalorder %s29, 9
      %p233 = pnand %p231, %p232
      %p234 = pneg %p233
      // Predicated region
      $region9: #{tpu_custom_call.1} parent=5 // pred_check
        _
      $region10: #{tpu_custom_call.1} parent=5 // pred_check_branch
        %236 = sbr.rel (%p233) target = $region12
      $region11: #{tpu_custom_call.1} parent=5 // pred_region
        %s237 = ssub.s32 %s29, 1
        // Predicated region
        $region13: #{tpu_custom_call.1} parent=11 // pred_check
          %p238 = pneg %p90
        $region14: #{tpu_custom_call.1} parent=11 // pred_check_branch
          %240 = sbr.rel (%p238) target = $region16
        $region15: #{tpu_custom_call.1} parent=11 // pred_region
          %242 = vsyncadd [#allocation8], 0
          %s243 = sshll.u32 %s2, 4
          %s244 = int_to_ptr.hbm [resolvable:$true] %s243
          %s245 = sshll.u32 [#allocation7], 4
          %s246 = int_to_ptr.vmem [resolvable:$true] %s245
          %251 = dma.hbm_to_vmem [thread:$0]  %s244, 1024, %s246, [#allocation8], 64, 64, 4
        $region16: #{tpu_custom_call.1} parent=11 // pred_fallthru
          _
        // Predicated region
        $region17: #{tpu_custom_call.1} parent=11 // pred_check
          %p252 = pneg %p111
        $region18: #{tpu_custom_call.1} parent=11 // pred_check_branch
          %254 = sbr.rel (%p252) target = $region20
        $region19: #{tpu_custom_call.1} parent=11 // pred_region
          _
        $region20: #{tpu_custom_call.1} parent=11 // pred_fallthru
          _
        // Predicated region
        $region21: #{tpu_custom_call.1} parent=11 // pred_check
          %p255 = pneg %p132
        $region22: #{tpu_custom_call.1} parent=11 // pred_check_branch
          %257 = sbr.rel (%p255) target = $region24
        $region23: #{tpu_custom_call.1} parent=11 // pred_region
          _
        $region24: #{tpu_custom_call.1} parent=11 // pred_fallthru
          _
        // Predicated region
        $region25: #{tpu_custom_call.1} parent=11 // pred_check
          %p258 = pneg %p153
        $region26: #{tpu_custom_call.1} parent=11 // pred_check_branch
          %260 = sbr.rel (%p258) target = $region28
        $region27: #{tpu_custom_call.1} parent=11 // pred_region
          %262 = vsyncadd [#allocation8], 0
          %s263 = sshll.u32 %s5, 4
          %s264 = int_to_ptr.hbm [resolvable:$true] %s263
          %s265 = sshll.u32 [#allocation9], 4
          %s266 = int_to_ptr.vmem [resolvable:$true] %s265
          %271 = dma.hbm_to_vmem [thread:$0]  %s264, 1024, %s266, [#allocation8], 64, 64, 4
        $region28: #{tpu_custom_call.1} parent=11 // pred_fallthru
          _
        // Predicated region
        $region29: #{tpu_custom_call.1} parent=11 // pred_check
          %p272 = pneg %p174
        $region30: #{tpu_custom_call.1} parent=11 // pred_check_branch
          %274 = sbr.rel (%p272) target = $region32
        $region31: #{tpu_custom_call.1} parent=11 // pred_region
          _
        $region32: #{tpu_custom_call.1} parent=11 // pred_fallthru
          _
        // Predicated region
        $region33: #{tpu_custom_call.1} parent=11 // pred_check
          %p275 = pneg %p195
        $region34: #{tpu_custom_call.1} parent=11 // pred_check_branch
          %277 = sbr.rel (%p275) target = $region36
        $region35: #{tpu_custom_call.1} parent=11 // pred_region
          _
        $region36: #{tpu_custom_call.1} parent=11 // pred_fallthru
          _
      $region12: #{tpu_custom_call.1} parent=5 // pred_fallthru
        _
      %p278 = scmp.lt.s32.totalorder %s29, 8
      // Predicated region
      $region37: #{tpu_custom_call.1} parent=5 // pred_check
        %p279 = pneg %p278
      $region38: #{tpu_custom_call.1} parent=5 // pred_check_branch
        %281 = sbr.rel (%p279) target = $region40
      $region39: #{tpu_custom_call.1} parent=5 // pred_region
        // Predicated region
        $region41: #{tpu_custom_call.1} parent=39 // pred_check
          %p282 = pneg %p63
        $region42: #{tpu_custom_call.1} parent=39 // pred_check_branch
          %284 = sbr.rel (%p282) target = $region44
        $region43: #{tpu_custom_call.1} parent=39 // pred_region
          %s285 = sand.u32 %s53, 1
          %s286 = scalar_lea.sflag [#allocation5], %s285
          %s287 = sand.u32 %s53, 1
          %s288 = smul.addr %s287, 128
          %s289 = scalar_lea.vmem [#allocation4], %s288
          %s290 = smul.u32 32, %s37
          %292 = vsyncadd %s286, 0
          %s293 = smul.addr %s36, 64
          %s294 = sadd.s32 %s290, %s293
          %s295 = smul.addr %s294, 4
          %s296 = scalar_lea.hbm %s1, %s295
          %s297 = sshll.u32 %s296, 4
          %s298 = int_to_ptr.hbm [resolvable:$true] %s297
          %s299 = sshll.u32 %s289, 4
          %s300 = int_to_ptr.vmem [resolvable:$true] %s299
          %305 = dma.hbm_to_vmem [thread:$0]  %s298, 2048, %s300, %s286, 64, 64, 4
        $region44: #{tpu_custom_call.1} parent=39 // pred_fallthru
          _
      $region40: #{tpu_custom_call.1} parent=5 // pred_fallthru
        _
      %p306 = scmp.le.s32.totalorder 1, %s29
      %p307 = scmp.lt.s32.totalorder %s29, 9
      %p308 = pnand %p306, %p307
      %p309 = pneg %p308
      // Predicated region
      $region45: #{tpu_custom_call.1} parent=5 // pred_check
        _
      $region46: #{tpu_custom_call.1} parent=5 // pred_check_branch
        %311 = sbr.rel (%p308) target = $region48
      $region47: #{tpu_custom_call.1} parent=5 // pred_region
        %s312 = ssub.s32 %s29, 1
        %s313 = sand.u32 %s56, 1
        %s314 = scalar_lea.sflag [#allocation5], %s313
        %s315 = sand.u32 %s56, 1
        %s316 = smul.addr %s315, 128
        %s317 = scalar_lea.vmem [#allocation4], %s316
        // Predicated region
        $region49: #{tpu_custom_call.1} parent=47 // pred_check
          %p318 = pneg %p69
        $region50: #{tpu_custom_call.1} parent=47 // pred_check_branch
          %320 = sbr.rel (%p318) target = $region52
        $region51: #{tpu_custom_call.1} parent=47 // pred_region
          %322 = dma.done %s314, 2048
        $region52: #{tpu_custom_call.1} parent=47 // pred_fallthru
          _
        // Predicated region
        $region53: #{tpu_custom_call.1} parent=47 // pred_check
          %p323 = pneg %p90
        $region54: #{tpu_custom_call.1} parent=47 // pred_check_branch
          %325 = sbr.rel (%p323) target = $region56
        $region55: #{tpu_custom_call.1} parent=47 // pred_region
          %327 = dma.done [#allocation8], 1024
        $region56: #{tpu_custom_call.1} parent=47 // pred_fallthru
          _
        // Predicated region
        $region57: #{tpu_custom_call.1} parent=47 // pred_check
          %p328 = pneg %p153
        $region58: #{tpu_custom_call.1} parent=47 // pred_check_branch
          %330 = sbr.rel (%p328) target = $region60
        $region59: #{tpu_custom_call.1} parent=47 // pred_region
          %332 = dma.done [#allocation8], 1024
        $region60: #{tpu_custom_call.1} parent=47 // pred_fallthru
          _
        %s333 = sand.u32 %s56, 1
        %s334 = scalar_lea.sflag [#allocation5], %s333
        %s335 = sand.u32 %s56, 1
        %s336 = smul.addr %s335, 128
        %s337 = scalar_lea.vmem [#allocation4], %s336
        %p338 = pneg %p69
        %p339 = pneg %p66
        %p340 = pneg %p90
        %p341 = pneg %p87
        %p342 = pneg %p111
        %p343 = pneg %p108
        %p344 = pneg %p132
        %p345 = pneg %p129
        %p346 = pneg %p153
        %p347 = pneg %p150
        %p348 = pneg %p174
        %p349 = pneg %p171
        %p350 = pneg %p195
        %p351 = pneg %p192
        %p352 = pneg %p223
        %p353 = pneg %p220
        %s354 = sand.u32 %s210, 1
        %s355 = scalar_lea.sflag [#allocation6], %s354
        %s356 = sand.u32 %s210, 1
        %s357 = smul.addr %s356, 256
        %s358 = scalar_lea.vmem [#allocation10], %s357
        %s359 = smul.u32 32, %s39
        %s360 = smul.u32 32, %s39
        %s361 = sld [smem:[#allocation3 + %s38]]
        %v362 = vld [vmem:[%s3] sm:$0x1]
        %v363 = vstv %s361
        %v364 = vmul.f32 %v363, %v362
        %v365 = vld [vmem:[%s4] sm:$0x1]
        %v366 = vadd.f32 %v364, %v365
        %v367 = vld [vmem:[%s6] sm:$0x1]
        %v368 = vmul.f32 %v363, %v367
        %v369 = vld [vmem:[%s7] sm:$0x1]
        %v370 = vadd.f32 %v368, %v369
        %v371 = vld [vmem:[%s317] sm:$0xf]
        %v372 = vld [vmem:[%s317 + $0x4] sm:$0xf]
        %v373 = vld [vmem:[%s317 + $0x8] sm:$0xf]
        %v374 = vld [vmem:[%s317 + $0xc] sm:$0xf]
        %v375 = vld [vmem:[%s317 + $0x10] sm:$0xf]
        %v376 = vld [vmem:[%s317 + $0x14] sm:$0xf]
        %v377 = vld [vmem:[%s317 + $0x18] sm:$0xf]
        %v378 = vld [vmem:[%s317 + $0x1c] sm:$0xf]
        %v379 = vld [vmem:[%s317 + $0x20] sm:$0xf]
        %v380 = vld [vmem:[%s317 + $0x24] sm:$0xf]
        %v381 = vld [vmem:[%s317 + $0x28] sm:$0xf]
        %v382 = vld [vmem:[%s317 + $0x2c] sm:$0xf]
        %v383 = vld [vmem:[%s317 + $0x30] sm:$0xf]
        %v384 = vld [vmem:[%s317 + $0x34] sm:$0xf]
        %v385 = vld [vmem:[%s317 + $0x38] sm:$0xf]
        %v386 = vld [vmem:[%s317 + $0x3c] sm:$0xf]
        %v387 = vld [vmem:[%s317 + $0x40] sm:$0xf]
        %v388 = vld [vmem:[%s317 + $0x44] sm:$0xf]
        %v389 = vld [vmem:[%s317 + $0x48] sm:$0xf]
        %v390 = vld [vmem:[%s317 + $0x4c] sm:$0xf]
        %v391 = vld [vmem:[%s317 + $0x50] sm:$0xf]
        %v392 = vld [vmem:[%s317 + $0x54] sm:$0xf]
        %v393 = vld [vmem:[%s317 + $0x58] sm:$0xf]
        %v394 = vld [vmem:[%s317 + $0x5c] sm:$0xf]
        %v395 = vld [vmem:[%s317 + $0x60] sm:$0xf]
        %v396 = vld [vmem:[%s317 + $0x64] sm:$0xf]
        %v397 = vld [vmem:[%s317 + $0x68] sm:$0xf]
        %v398 = vld [vmem:[%s317 + $0x6c] sm:$0xf]
        %v399 = vld [vmem:[%s317 + $0x70] sm:$0xf]
        %v400 = vld [vmem:[%s317 + $0x74] sm:$0xf]
        %v401 = vld [vmem:[%s317 + $0x78] sm:$0xf]
        %v402 = vld [vmem:[%s317 + $0x7c] sm:$0xf]
        %v403 = vld [vmem:[#allocation7] sm:$0xf]
        %v404 = vld [vmem:[#allocation7 + $0x4] sm:$0xf]
        %v405 = vld [vmem:[#allocation7 + $0x8] sm:$0xf]
        %v406 = vld [vmem:[#allocation7 + $0xc] sm:$0xf]
        %v407 = vld [vmem:[#allocation7 + $0x10] sm:$0xf]
        %v408 = vld [vmem:[#allocation7 + $0x14] sm:$0xf]
        %v409 = vld [vmem:[#allocation7 + $0x18] sm:$0xf]
        %v410 = vld [vmem:[#allocation7 + $0x1c] sm:$0xf]
        %v411 = vld [vmem:[#allocation7 + $0x20] sm:$0xf]
        %v412 = vld [vmem:[#allocation7 + $0x24] sm:$0xf]
        %v413 = vld [vmem:[#allocation7 + $0x28] sm:$0xf]
        %v414 = vld [vmem:[#allocation7 + $0x2c] sm:$0xf]
        %v415 = vld [vmem:[#allocation7 + $0x30] sm:$0xf]
        %v416 = vld [vmem:[#allocation7 + $0x34] sm:$0xf]
        %v417 = vld [vmem:[#allocation7 + $0x38] sm:$0xf]
        %v418 = vld [vmem:[#allocation7 + $0x3c] sm:$0xf]
        %v420 = vperm.slane %v366, 0
        %v454 = vunpack.c.l.b16 %v371
        %v455 = vunpack.c.l.b16 %v372
        %v456 = vunpack.c.l.b16 %v373
        %v457 = vunpack.c.l.b16 %v374
        %v458 = vunpack.c.l.b16 %v375
        %v459 = vunpack.c.l.b16 %v376
        %v460 = vunpack.c.l.b16 %v377
        %v461 = vunpack.c.l.b16 %v378
        %v462 = vunpack.c.l.b16 %v379
        %v463 = vunpack.c.l.b16 %v380
        %v464 = vunpack.c.l.b16 %v381
        %v465 = vunpack.c.l.b16 %v382
        %v466 = vunpack.c.l.b16 %v383
        %v467 = vunpack.c.l.b16 %v384
        %v468 = vunpack.c.l.b16 %v385
        %v469 = vunpack.c.l.b16 %v386
        %v470 = vunpack.c.l.b16 %v387
        %v471 = vunpack.c.l.b16 %v388
        %v472 = vunpack.c.l.b16 %v389
        %v473 = vunpack.c.l.b16 %v390
        %v474 = vunpack.c.l.b16 %v391
        %v475 = vunpack.c.l.b16 %v392
        %v476 = vunpack.c.l.b16 %v393
        %v477 = vunpack.c.l.b16 %v394
        %v478 = vunpack.c.l.b16 %v395
        %v479 = vunpack.c.l.b16 %v396
        %v480 = vunpack.c.l.b16 %v397
        %v481 = vunpack.c.l.b16 %v398
        %v482 = vunpack.c.l.b16 %v399
        %v483 = vunpack.c.l.b16 %v400
        %v484 = vunpack.c.l.b16 %v401
        %v485 = vunpack.c.l.b16 %v402
        %v486 = vpack.c.b16 %v455, %v454
        %v487 = vpack.c.b16 %v457, %v456
        %v488 = vpack.c.b16 %v459, %v458
        %v489 = vpack.c.b16 %v461, %v460
        %v490 = vpack.c.b16 %v463, %v462
        %v491 = vpack.c.b16 %v465, %v464
        %v492 = vpack.c.b16 %v467, %v466
        %v493 = vpack.c.b16 %v469, %v468
        %v494 = vpack.c.b16 %v471, %v470
        %v495 = vpack.c.b16 %v473, %v472
        %v496 = vpack.c.b16 %v475, %v474
        %v497 = vpack.c.b16 %v477, %v476
        %v498 = vpack.c.b16 %v479, %v478
        %v499 = vpack.c.b16 %v481, %v480
        %v500 = vpack.c.b16 %v483, %v482
        %v501 = vpack.c.b16 %v485, %v484
        %v534 = vunpack.c.l.b16 %v403
        %v535 = vunpack.c.l.b16 %v404
        %v536 = vunpack.c.l.b16 %v405
        %v537 = vunpack.c.l.b16 %v406
        %v538 = vunpack.c.l.b16 %v407
        %v539 = vunpack.c.l.b16 %v408
        %v540 = vunpack.c.l.b16 %v409
        %v541 = vunpack.c.l.b16 %v410
        %v542 = vunpack.c.l.b16 %v411
        %v543 = vunpack.c.l.b16 %v412
        %v544 = vunpack.c.l.b16 %v413
        %v545 = vunpack.c.l.b16 %v414
        %v546 = vunpack.c.l.b16 %v415
        %v547 = vunpack.c.l.b16 %v416
        %v548 = vunpack.c.l.b16 %v417
        %v549 = vunpack.c.l.b16 %v418
        %v550 = vpack.c.b16 %v535, %v534
        %v551 = vpack.c.b16 %v537, %v536
        %v552 = vpack.c.b16 %v539, %v538
        %v553 = vpack.c.b16 %v541, %v540
        %v554 = vpack.c.b16 %v543, %v542
        %v555 = vpack.c.b16 %v545, %v544
        %v556 = vpack.c.b16 %v547, %v546
        %v557 = vpack.c.b16 %v549, %v548
        %566 = vmatpush.bf16.msra.mxu0 %v557
        %567 = vmatpush.bf16.msra.mxu0 %v556
        %568 = vmatpush.bf16.msra.mxu0 %v555
        %569 = vmatpush.bf16.msra.mxu0 %v554
        %570 = vmatpush.bf16.msra.mxu0 %v553
        %571 = vmatpush.bf16.msra.mxu0 %v552
        %572 = vmatpush.bf16.msra.mxu0 %v551
        %573 = vmatpush.bf16.msra.mxu0 %v550
        %574 = vmatmul.bf16.gmra.mxu0 %v486
        %v575 = vpop.f32.mrf.mxu0
        %v576 = vadd.f32 %v420, %v575
        %v577 = vpop.f32.mrf.mxu0
        %v578 = vadd.f32 %v420, %v577
        %579 = vmatmul.bf16.gmra.mxu0 %v487
        %v580 = vpop.f32.mrf.mxu0
        %v581 = vadd.f32 %v420, %v580
        %v582 = vpop.f32.mrf.mxu0
        %v583 = vadd.f32 %v420, %v582
        %584 = vmatmul.bf16.gmra.mxu0 %v488
        %v585 = vpop.f32.mrf.mxu0
        %v586 = vadd.f32 %v420, %v585
        %v587 = vpop.f32.mrf.mxu0
        %v588 = vadd.f32 %v420, %v587
        %589 = vmatmul.bf16.gmra.mxu0 %v489
        %v590 = vpop.f32.mrf.mxu0
        %v591 = vadd.f32 %v420, %v590
        %v592 = vpop.f32.mrf.mxu0
        %v593 = vadd.f32 %v420, %v592
        %594 = vmatmul.bf16.gmra.mxu0 %v490
        %v595 = vpop.f32.mrf.mxu0
        %v596 = vadd.f32 %v420, %v595
        %v597 = vpop.f32.mrf.mxu0
        %v598 = vadd.f32 %v420, %v597
        %599 = vmatmul.bf16.gmra.mxu0 %v491
        %v600 = vpop.f32.mrf.mxu0
        %v601 = vadd.f32 %v420, %v600
        %v602 = vpop.f32.mrf.mxu0
        %v603 = vadd.f32 %v420, %v602
        %604 = vmatmul.bf16.gmra.mxu0 %v492
        %v605 = vpop.f32.mrf.mxu0
        %v606 = vadd.f32 %v420, %v605
        %v607 = vpop.f32.mrf.mxu0
        %v608 = vadd.f32 %v420, %v607
        %609 = vmatmul.bf16.gmra.mxu0 %v493
        %v610 = vpop.f32.mrf.mxu0
        %v611 = vadd.f32 %v420, %v610
        %v612 = vpop.f32.mrf.mxu0
        %v613 = vadd.f32 %v420, %v612
        %614 = vmatmul.bf16.gmra.mxu0 %v494
        %v615 = vpop.f32.mrf.mxu0
        %v616 = vadd.f32 %v420, %v615
        %v617 = vpop.f32.mrf.mxu0
        %v618 = vadd.f32 %v420, %v617
        %619 = vmatmul.bf16.gmra.mxu0 %v495
        %v620 = vpop.f32.mrf.mxu0
        %v621 = vadd.f32 %v420, %v620
        %v622 = vpop.f32.mrf.mxu0
        %v623 = vadd.f32 %v420, %v622
        %624 = vmatmul.bf16.gmra.mxu0 %v496
        %v625 = vpop.f32.mrf.mxu0
        %v626 = vadd.f32 %v420, %v625
        %v627 = vpop.f32.mrf.mxu0
        %v628 = vadd.f32 %v420, %v627
        %629 = vmatmul.bf16.gmra.mxu0 %v497
        %v630 = vpop.f32.mrf.mxu0
        %v631 = vadd.f32 %v420, %v630
        %v632 = vpop.f32.mrf.mxu0
        %v633 = vadd.f32 %v420, %v632
        %634 = vmatmul.bf16.gmra.mxu0 %v498
        %v635 = vpop.f32.mrf.mxu0
        %v636 = vadd.f32 %v420, %v635
        %v637 = vpop.f32.mrf.mxu0
        %v638 = vadd.f32 %v420, %v637
        %639 = vmatmul.bf16.gmra.mxu0 %v499
        %v640 = vpop.f32.mrf.mxu0
        %v641 = vadd.f32 %v420, %v640
        %v642 = vpop.f32.mrf.mxu0
        %v643 = vadd.f32 %v420, %v642
        %644 = vmatmul.bf16.gmra.mxu0 %v500
        %v645 = vpop.f32.mrf.mxu0
        %v646 = vadd.f32 %v420, %v645
        %v647 = vpop.f32.mrf.mxu0
        %v648 = vadd.f32 %v420, %v647
        %649 = vmatmul.bf16.gmra.mxu0 %v501
        %v650 = vpop.f32.mrf.mxu0
        %v651 = vadd.f32 %v420, %v650
        %v652 = vpop.f32.mrf.mxu0
        %v653 = vadd.f32 %v420, %v652
        %654 = vdwg.mxu0
        %v655 = vtanh.pop %v576
        %v656 = vtanh.pop %v578
        %v657 = vtanh.pop %v581
        %v658 = vtanh.pop %v583
        %v659 = vtanh.pop %v586
        %v660 = vtanh.pop %v588
        %v661 = vtanh.pop %v591
        %v662 = vtanh.pop %v593
        %v663 = vtanh.pop %v596
        %v664 = vtanh.pop %v598
        %v665 = vtanh.pop %v601
        %v666 = vtanh.pop %v603
        %v667 = vtanh.pop %v606
        %v668 = vtanh.pop %v608
        %v669 = vtanh.pop %v611
        %v670 = vtanh.pop %v613
        %v671 = vtanh.pop %v616
        %v672 = vtanh.pop %v618
        %v673 = vtanh.pop %v621
        %v674 = vtanh.pop %v623
        %v675 = vtanh.pop %v626
        %v676 = vtanh.pop %v628
        %v677 = vtanh.pop %v631
        %v678 = vtanh.pop %v633
        %v679 = vtanh.pop %v636
        %v680 = vtanh.pop %v638
        %v681 = vtanh.pop %v641
        %v682 = vtanh.pop %v643
        %v683 = vtanh.pop %v646
        %v684 = vtanh.pop %v648
        %v685 = vtanh.pop %v651
        %v686 = vtanh.pop %v653
        %v687 = vpack.c.bf16 %v656, %v655
        %v688 = vpack.c.bf16 %v658, %v657
        %v689 = vpack.c.bf16 %v660, %v659
        %v690 = vpack.c.bf16 %v662, %v661
        %v691 = vpack.c.bf16 %v664, %v663
        %v692 = vpack.c.bf16 %v666, %v665
        %v693 = vpack.c.bf16 %v668, %v667
        %v694 = vpack.c.bf16 %v670, %v669
        %v695 = vpack.c.bf16 %v672, %v671
        %v696 = vpack.c.bf16 %v674, %v673
        %v697 = vpack.c.bf16 %v676, %v675
        %v698 = vpack.c.bf16 %v678, %v677
        %v699 = vpack.c.bf16 %v680, %v679
        %v700 = vpack.c.bf16 %v682, %v681
        %v701 = vpack.c.bf16 %v684, %v683
        %v702 = vpack.c.bf16 %v686, %v685
        %v703 = vld [vmem:[#allocation9] sm:$0xf]
        %v704 = vld [vmem:[#allocation9 + $0x4] sm:$0xf]
        %v705 = vld [vmem:[#allocation9 + $0x8] sm:$0xf]
        %v706 = vld [vmem:[#allocation9 + $0xc] sm:$0xf]
        %v707 = vld [vmem:[#allocation9 + $0x10] sm:$0xf]
        %v708 = vld [vmem:[#allocation9 + $0x14] sm:$0xf]
        %v709 = vld [vmem:[#allocation9 + $0x18] sm:$0xf]
        %v710 = vld [vmem:[#allocation9 + $0x1c] sm:$0xf]
        %v711 = vld [vmem:[#allocation9 + $0x20] sm:$0xf]
        %v712 = vld [vmem:[#allocation9 + $0x24] sm:$0xf]
        %v713 = vld [vmem:[#allocation9 + $0x28] sm:$0xf]
        %v714 = vld [vmem:[#allocation9 + $0x2c] sm:$0xf]
        %v715 = vld [vmem:[#allocation9 + $0x30] sm:$0xf]
        %v716 = vld [vmem:[#allocation9 + $0x34] sm:$0xf]
        %v717 = vld [vmem:[#allocation9 + $0x38] sm:$0xf]
        %v718 = vld [vmem:[#allocation9 + $0x3c] sm:$0xf]
        %v720 = vperm.slane %v370, 0
        %v738 = vunpack.c.l.b16 %v703
        %v739 = vunpack.c.l.b16 %v704
        %v740 = vunpack.c.l.b16 %v705
        %v741 = vunpack.c.l.b16 %v706
        %v742 = vunpack.c.l.b16 %v707
        %v743 = vunpack.c.l.b16 %v708
        %v744 = vunpack.c.l.b16 %v709
        %v745 = vunpack.c.l.b16 %v710
        %v746 = vunpack.c.l.b16 %v711
        %v747 = vunpack.c.l.b16 %v712
        %v748 = vunpack.c.l.b16 %v713
        %v749 = vunpack.c.l.b16 %v714
        %v750 = vunpack.c.l.b16 %v715
        %v751 = vunpack.c.l.b16 %v716
        %v752 = vunpack.c.l.b16 %v717
        %v753 = vunpack.c.l.b16 %v718
        %v754 = vpack.c.b16 %v739, %v738
        %v755 = vpack.c.b16 %v741, %v740
        %v756 = vpack.c.b16 %v743, %v742
        %v757 = vpack.c.b16 %v745, %v744
        %v758 = vpack.c.b16 %v747, %v746
        %v759 = vpack.c.b16 %v749, %v748
        %v760 = vpack.c.b16 %v751, %v750
        %v761 = vpack.c.b16 %v753, %v752
        %770 = vmatpush.bf16.msra.mxu0 %v761
        %771 = vmatpush.bf16.msra.mxu0 %v760
        %772 = vmatpush.bf16.msra.mxu0 %v759
        %773 = vmatpush.bf16.msra.mxu0 %v758
        %774 = vmatpush.bf16.msra.mxu0 %v757
        %775 = vmatpush.bf16.msra.mxu0 %v756
        %776 = vmatpush.bf16.msra.mxu0 %v755
        %777 = vmatpush.bf16.msra.mxu0 %v754
        %778 = vmatmul.bf16.gmra.mxu0 %v687
        %v779 = vpop.f32.mrf.mxu0
        %v780 = vadd.f32 %v720, %v779
        %v781 = vpop.f32.mrf.mxu0
        %v782 = vadd.f32 %v720, %v781
        %783 = vmatmul.bf16.gmra.mxu0 %v688
        %v784 = vpop.f32.mrf.mxu0
        %v785 = vadd.f32 %v720, %v784
        %v786 = vpop.f32.mrf.mxu0
        %v787 = vadd.f32 %v720, %v786
        %788 = vmatmul.bf16.gmra.mxu0 %v689
        %v789 = vpop.f32.mrf.mxu0
        %v790 = vadd.f32 %v720, %v789
        %v791 = vpop.f32.mrf.mxu0
        %v792 = vadd.f32 %v720, %v791
        %793 = vmatmul.bf16.gmra.mxu0 %v690
        %v794 = vpop.f32.mrf.mxu0
        %v795 = vadd.f32 %v720, %v794
        %v796 = vpop.f32.mrf.mxu0
        %v797 = vadd.f32 %v720, %v796
        %798 = vmatmul.bf16.gmra.mxu0 %v691
        %v799 = vpop.f32.mrf.mxu0
        %v800 = vadd.f32 %v720, %v799
        %v801 = vpop.f32.mrf.mxu0
        %v802 = vadd.f32 %v720, %v801
        %803 = vmatmul.bf16.gmra.mxu0 %v692
        %v804 = vpop.f32.mrf.mxu0
        %v805 = vadd.f32 %v720, %v804
        %v806 = vpop.f32.mrf.mxu0
        %v807 = vadd.f32 %v720, %v806
        %808 = vmatmul.bf16.gmra.mxu0 %v693
        %v809 = vpop.f32.mrf.mxu0
        %v810 = vadd.f32 %v720, %v809
        %v811 = vpop.f32.mrf.mxu0
        %v812 = vadd.f32 %v720, %v811
        %813 = vmatmul.bf16.gmra.mxu0 %v694
        %v814 = vpop.f32.mrf.mxu0
        %v815 = vadd.f32 %v720, %v814
        %v816 = vpop.f32.mrf.mxu0
        %v817 = vadd.f32 %v720, %v816
        %818 = vmatmul.bf16.gmra.mxu0 %v695
        %v819 = vpop.f32.mrf.mxu0
        %v820 = vadd.f32 %v720, %v819
        %v821 = vpop.f32.mrf.mxu0
        %v822 = vadd.f32 %v720, %v821
        %823 = vmatmul.bf16.gmra.mxu0 %v696
        %v824 = vpop.f32.mrf.mxu0
        %v825 = vadd.f32 %v720, %v824
        %v826 = vpop.f32.mrf.mxu0
        %v827 = vadd.f32 %v720, %v826
        %828 = vmatmul.bf16.gmra.mxu0 %v697
        %v829 = vpop.f32.mrf.mxu0
        %v830 = vadd.f32 %v720, %v829
        %v831 = vpop.f32.mrf.mxu0
        %v832 = vadd.f32 %v720, %v831
        %833 = vmatmul.bf16.gmra.mxu0 %v698
        %v834 = vpop.f32.mrf.mxu0
        %v835 = vadd.f32 %v720, %v834
        %v836 = vpop.f32.mrf.mxu0
        %v837 = vadd.f32 %v720, %v836
        %838 = vmatmul.bf16.gmra.mxu0 %v699
        %v839 = vpop.f32.mrf.mxu0
        %v840 = vadd.f32 %v720, %v839
        %v841 = vpop.f32.mrf.mxu0
        %v842 = vadd.f32 %v720, %v841
        %843 = vmatmul.bf16.gmra.mxu0 %v700
        %v844 = vpop.f32.mrf.mxu0
        %v845 = vadd.f32 %v720, %v844
        %v846 = vpop.f32.mrf.mxu0
        %v847 = vadd.f32 %v720, %v846
        %848 = vmatmul.bf16.gmra.mxu0 %v701
        %v849 = vpop.f32.mrf.mxu0
        %v850 = vadd.f32 %v720, %v849
        %v851 = vpop.f32.mrf.mxu0
        %v852 = vadd.f32 %v720, %v851
        %853 = vmatmul.bf16.gmra.mxu0 %v702
        %v854 = vpop.f32.mrf.mxu0
        %v855 = vadd.f32 %v720, %v854
        %v856 = vpop.f32.mrf.mxu0
        %v857 = vadd.f32 %v720, %v856
        %858 = vdwg.mxu0
        %859 = vst [vmem:[%s358] sm:$0xff] %v780
        %860 = vst [vmem:[%s358 + $0x8] sm:$0xff] %v782
        %861 = vst [vmem:[%s358 + $0x10] sm:$0xff] %v785
        %862 = vst [vmem:[%s358 + $0x18] sm:$0xff] %v787
        %863 = vst [vmem:[%s358 + $0x20] sm:$0xff] %v790
        %864 = vst [vmem:[%s358 + $0x28] sm:$0xff] %v792
        %865 = vst [vmem:[%s358 + $0x30] sm:$0xff] %v795
        %866 = vst [vmem:[%s358 + $0x38] sm:$0xff] %v797
        %867 = vst [vmem:[%s358 + $0x40] sm:$0xff] %v800
        %868 = vst [vmem:[%s358 + $0x48] sm:$0xff] %v802
        %869 = vst [vmem:[%s358 + $0x50] sm:$0xff] %v805
        %870 = vst [vmem:[%s358 + $0x58] sm:$0xff] %v807
        %871 = vst [vmem:[%s358 + $0x60] sm:$0xff] %v810
        %872 = vst [vmem:[%s358 + $0x68] sm:$0xff] %v812
        %873 = vst [vmem:[%s358 + $0x70] sm:$0xff] %v815
        %874 = vst [vmem:[%s358 + $0x78] sm:$0xff] %v817
        %875 = vst [vmem:[%s358 + $0x80] sm:$0xff] %v820
        %876 = vst [vmem:[%s358 + $0x88] sm:$0xff] %v822
        %877 = vst [vmem:[%s358 + $0x90] sm:$0xff] %v825
        %878 = vst [vmem:[%s358 + $0x98] sm:$0xff] %v827
        %879 = vst [vmem:[%s358 + $0xa0] sm:$0xff] %v830
        %880 = vst [vmem:[%s358 + $0xa8] sm:$0xff] %v832
        %881 = vst [vmem:[%s358 + $0xb0] sm:$0xff] %v835
        %882 = vst [vmem:[%s358 + $0xb8] sm:$0xff] %v837
        %883 = vst [vmem:[%s358 + $0xc0] sm:$0xff] %v840
        %884 = vst [vmem:[%s358 + $0xc8] sm:$0xff] %v842
        %885 = vst [vmem:[%s358 + $0xd0] sm:$0xff] %v845
        %886 = vst [vmem:[%s358 + $0xd8] sm:$0xff] %v847
        %887 = vst [vmem:[%s358 + $0xe0] sm:$0xff] %v850
        %888 = vst [vmem:[%s358 + $0xe8] sm:$0xff] %v852
        %889 = vst [vmem:[%s358 + $0xf0] sm:$0xff] %v855
        %890 = vst [vmem:[%s358 + $0xf8] sm:$0xff] %v857
        %s891 = sand.u32 %s210, 1
        %s892 = scalar_lea.sflag [#allocation6], %s891
        %s893 = sand.u32 %s210, 1
        %s894 = smul.addr %s893, 256
        %s895 = scalar_lea.vmem [#allocation10], %s894
        // Predicated region
        $region61: #{tpu_custom_call.1} parent=47 // pred_check
          %p896 = pneg %p220
        $region62: #{tpu_custom_call.1} parent=47 // pred_check_branch
          %898 = sbr.rel (%p896) target = $region64
        $region63: #{tpu_custom_call.1} parent=47 // pred_region
          %s899 = smul.u32 32, %s39
          %901 = vsyncadd %s892, 0
          %s902 = smul.addr %s38, 64
          %s903 = sadd.s32 %s899, %s902
          %s904 = smul.addr %s903, 8
          %s905 = scalar_lea.hbm %s8, %s904
          %s906 = sshll.u32 %s895, 4
          %s907 = int_to_ptr.vmem [resolvable:$true] %s906
          %s908 = sshll.u32 %s905, 4
          %s909 = int_to_ptr.hbm [resolvable:$true] %s908
          %914 = dma.vmem_to_hbm [thread:$0]  %s907, 4096, %s909, %s892, 128, 128, 8
        $region64: #{tpu_custom_call.1} parent=47 // pred_fallthru
          _
      $region48: #{tpu_custom_call.1} parent=5 // pred_fallthru
        _
      %p915 = scmp.le.s32.totalorder 2, %s29
      // Predicated region
      $region65: #{tpu_custom_call.1} parent=5 // pred_check
        %p916 = pneg %p915
      $region66: #{tpu_custom_call.1} parent=5 // pred_check_branch
        %918 = sbr.rel (%p916) target = $region68
      $region67: #{tpu_custom_call.1} parent=5 // pred_region
        %s919 = ssub.s32 %s29, 2
        // Predicated region
        $region69: #{tpu_custom_call.1} parent=67 // pred_check
          %p920 = pneg %p226
        $region70: #{tpu_custom_call.1} parent=67 // pred_check_branch
          %922 = sbr.rel (%p920) target = $region72
        $region71: #{tpu_custom_call.1} parent=67 // pred_region
          %s923 = sand.u32 %s211, 1
          %s924 = scalar_lea.sflag [#allocation6], %s923
          %s925 = sand.u32 %s211, 1
          %s926 = smul.addr %s925, 256
          %s927 = scalar_lea.vmem [#allocation10], %s926
          %929 = dma.done %s924, 4096
        $region72: #{tpu_custom_call.1} parent=67 // pred_fallthru
          _
      $region68: #{tpu_custom_call.1} parent=5 // pred_fallthru
        _
    $region6: #{tpu_custom_call.1} parent=1 // loop_footer
      %s33 = sadd.s32 1, %s29
    $region7: #{tpu_custom_call.1} parent=1 // loop_footer_branch
      %28 = sbr.rel target = $region3
    $region8: #{tpu_custom_call.1} parent=1 // loop_exit
      _
    %930 = vsyncpa [#allocation5], 1
    %s931 = scalar_lea.sflag [#allocation5], 1
    %932 = vsyncpa %s931, 1
    %933 = vsyncpa [#allocation8], 1
    %934 = vsyncpa [#allocation6], 1
    %s935 = scalar_lea.sflag [#allocation6], 1
    %936 = vsyncpa %s935, 1

</llo_original>
